<compile_context>
chip_gen: v7x
topology: tpu7x:2x2x1
jax: 0.10.0
libtpu: 0.0.40
codegen_flags: <defaults>
</compile_context>

<pallas_src>
import jax
import jax.numpy as jnp
from jax.experimental import pallas as pl
from jax.experimental.pallas import tpu as pltpu


# ----------------------------------------------------------------------------
# Model configuration (synthetic, deterministic init)
# ----------------------------------------------------------------------------
X_DIM = 32
HIDDEN_DIMS = [64, 32]        # encoder hidden sizes (decoder uses reversed)
Z_DIM = 16
BATCH = 8

# Static layer table: (in_features, out_features, relu).
# Encoder hidden layers, then the split mu / logvar heads, then decoder.
LAYER_SPECS = [
    (X_DIM,           HIDDEN_DIMS[0], True),   # 0 enc layer 0
    (HIDDEN_DIMS[0],  HIDDEN_DIMS[1], True),   # 1 enc layer 1
    (HIDDEN_DIMS[1],  Z_DIM,          False),  # 2 mu head
    (HIDDEN_DIMS[1],  Z_DIM,          False),  # 3 logvar head
    (Z_DIM,           HIDDEN_DIMS[1], True),   # 4 dec layer 0
    (HIDDEN_DIMS[1],  HIDDEN_DIMS[0], True),   # 5 dec layer 1
    (HIDDEN_DIMS[0],  X_DIM,          False),  # 6 dec output
]

W_PACK_COLS = max(c for _, c, _ in LAYER_SPECS)            # 64 lanes
_W_OFFSETS = []
_r = 0
for _rows, _, _ in LAYER_SPECS:
    _W_OFFSETS.append(_r)
    _r += _rows
W_PACK_ROWS = _r                                           # 272 rows
BIAS_STRIDE = 8                                            # aligned sublane start
B_PACK_ROWS = BIAS_STRIDE * len(LAYER_SPECS)               # 56 rows

OUT_WIDTH = X_DIM + 2 * Z_DIM                              # recon | mu | logvar


# ----------------------------------------------------------------------------
# Parameter init (mirrors VAE.__init__ layer shapes) + packing
# ----------------------------------------------------------------------------
def _make_param_layers(key):
    """Deterministic init mirroring torch.nn.Linear defaults.

    Returns the 7 (w, b) pairs in LAYER_SPECS order. The combined encoder head
    Linear(hidden, 2*z_dim) is generated as one layer and split column-wise
    into mu / logvar halves, which matches torch's result.view(-1, 2, z_dim).
    """
    def linear(k, fan_in, fan_out):
        kw, kb = jax.random.split(k)
        bound = 1.0 / jnp.sqrt(jnp.float32(fan_in))
        w = jax.random.uniform(kw, (fan_in, fan_out), jnp.float32, -bound, bound)
        b = jax.random.uniform(kb, (fan_out,), jnp.float32, -bound, bound)
        return w, b

    keys = jax.random.split(key, 6)

    enc_dims = [X_DIM] + HIDDEN_DIMS + [2 * Z_DIM]
    enc = [linear(keys[i], enc_dims[i], enc_dims[i + 1]) for i in range(3)]

    dec_dims = [Z_DIM] + list(reversed(HIDDEN_DIMS)) + [X_DIM]
    dec = [linear(keys[3 + i], dec_dims[i], dec_dims[i + 1]) for i in range(3)]

    w_head, b_head = enc[2]
    layers = [
        enc[0],
        enc[1],
        (w_head[:, :Z_DIM], b_head[:Z_DIM]),    # mu head
        (w_head[:, Z_DIM:], b_head[Z_DIM:]),    # logvar head
        dec[0],
        dec[1],
        dec[2],
    ]
    return layers


def pack_params(layers):
    """Pack all weights into one bf16 buffer and all biases into one f32 buffer."""
    w_pack = jnp.zeros((W_PACK_ROWS, W_PACK_COLS), jnp.float32)
    b_pack = jnp.zeros((B_PACK_ROWS, W_PACK_COLS), jnp.float32)
    for idx, (w, b) in enumerate(layers):
        rows, cols, _ = LAYER_SPECS[idx]
        r0 = _W_OFFSETS[idx]
        w_pack = w_pack.at[r0:r0 + rows, 0:cols].set(w)
        b_pack = b_pack.at[idx * BIAS_STRIDE, 0:cols].set(b)
    return w_pack.astype(jnp.bfloat16), b_pack


# ----------------------------------------------------------------------------
# Pallas kernel: fused VAE forward
# ----------------------------------------------------------------------------
def _vae_kernel(x_ref, eps_ref, w_ref, b_ref, out_ref):
    def linear(a, idx):
        rows, cols, relu = LAYER_SPECS[idx]
        r0 = _W_OFFSETS[idx]
        w = w_ref[r0:r0 + rows, 0:cols]                          # bf16, lane offset 0
        b = b_ref[idx * BIAS_STRIDE:idx * BIAS_STRIDE + 1, 0:cols]  # f32 (1, cols)
        y = jnp.dot(a.astype(jnp.bfloat16), w,
                    preferred_element_type=jnp.float32) + b
        return jnp.maximum(y, 0.0) if relu else y

    x = x_ref[...]

    # ---------------- encoder ----------------
    h = linear(x, 0)
    h = linear(h, 1)
    mu = linear(h, 2)          # (B, Z_DIM), lane-0-based (no post-matmul slice)
    logvar = linear(h, 3)      # (B, Z_DIM)

    # ---------------- reparameterize ----------------
    std = jnp.exp(0.5 * logvar)          # f32 on the EUP
    z = eps_ref[...] * std + mu

    # ---------------- decoder ----------------
    d = linear(z, 4)
    d = linear(d, 5)
    recon = linear(d, 6)

    # Single lane-dense output slab: recon | mu | logvar.
    out_ref[...] = jnp.concatenate([recon, mu, logvar], axis=-1)


def vae_forward(x, eps, w_pack, b_pack):
    """Runs the fused VAE forward. Returns (recon, mu, logvar)."""
    batch = x.shape[0]
    vmem = pl.BlockSpec(memory_space=pltpu.MemorySpace.VMEM)
    out = pl.pallas_call(
        _vae_kernel,
        out_shape=jax.ShapeDtypeStruct((batch, OUT_WIDTH), jnp.float32),
        in_specs=[vmem, vmem, vmem, vmem],
        out_specs=vmem,
    )(x, eps, w_pack, b_pack)
    recon = out[:, :X_DIM]
    mu = out[:, X_DIM:X_DIM + Z_DIM]
    logvar = out[:, X_DIM + Z_DIM:]
    return recon, mu, logvar


# ----------------------------------------------------------------------------
# Pure-JAX reference (same bf16-operand / f32-accum semantics) for checking
# ----------------------------------------------------------------------------
def vae_forward_ref(x, eps, layers):
    def lin(a, idx):
        rows, cols, relu = LAYER_SPECS[idx]
        w, b = layers[idx]
        y = jnp.dot(a.astype(jnp.bfloat16), w.astype(jnp.bfloat16),
                    preferred_element_type=jnp.float32) + b
        return jnp.maximum(y, 0.0) if relu else y

    h = lin(x, 0)
    h = lin(h, 1)
    mu = lin(h, 2)
    logvar = lin(h, 3)
    z = eps * jnp.exp(0.5 * logvar) + mu
    d = lin(z, 4)
    d = lin(d, 5)
    recon = lin(d, 6)
    return recon, mu, logvar


if __name__ == "__main__":
    key = jax.random.PRNGKey(0)
    k_params, k_x, k_eps = jax.random.split(key, 3)

    layers = _make_param_layers(k_params)
    w_pack, b_pack = pack_params(layers)

    x = jax.random.normal(k_x, (BATCH, X_DIM), jnp.float32)
    # eps for the reparameterization trick (torch.randn_like in the reference)
    eps = jax.random.normal(k_eps, (BATCH, Z_DIM), jnp.float32)

    recon, mu, logvar = vae_forward(x, eps, w_pack, b_pack)
    jax.block_until_ready((recon, mu, logvar))

    recon_r, mu_r, logvar_r = vae_forward_ref(x, eps, layers)
    assert recon.shape == (BATCH, X_DIM)
    assert mu.shape == (BATCH, Z_DIM) and logvar.shape == (BATCH, Z_DIM)
    assert jnp.allclose(recon, recon_r, atol=1e-2, rtol=1e-2)
    assert jnp.allclose(mu, mu_r, atol=1e-2, rtol=1e-2)
    assert jnp.allclose(logvar, logvar_r, atol=1e-2, rtol=1e-2)

    print("KERNEL_OK")
</pallas_src>

<mosaic_0001>
module attributes {stable_mosaic.version = 11 : i64} {
  func.func @_vae_kernel(%arg0: memref<8x32xf32, #tpu.memory_space<vmem>>, %arg1: memref<8x16xf32, #tpu.memory_space<vmem>>, %arg2: memref<272x64xbf16, #tpu.memory_space<vmem>>, %arg3: memref<56x64xf32, #tpu.memory_space<vmem>>, %arg4: memref<8x64xf32, #tpu.memory_space<vmem>>) attributes {dimension_semantics = [], scalar_prefetch = 0 : i64, scratch_operands = 0 : i64, tpu.core_type = #tpu.core_type<tc>} {
    %c0 = arith.constant 0 : index
    %c0_0 = arith.constant 0 : index
    %0 = vector.load %arg0[%c0, %c0_0] : memref<8x32xf32, #tpu.memory_space<vmem>>, vector<8x32xf32>
    %c0_1 = arith.constant 0 : index
    %c0_2 = arith.constant 0 : index
    %1 = vector.load %arg2[%c0_1, %c0_2] : memref<272x64xbf16, #tpu.memory_space<vmem>>, vector<32x64xbf16>
    %c0_3 = arith.constant 0 : index
    %c0_4 = arith.constant 0 : index
    %2 = vector.load %arg3[%c0_3, %c0_4] : memref<56x64xf32, #tpu.memory_space<vmem>>, vector<1x64xf32>
    %3 = arith.truncf %0 : vector<8x32xf32> to vector<8x32xbf16>
    %cst = arith.constant dense<0.000000e+00> : vector<8x64xf32>
    %4 = tpu.matmul %3, %1, %cst {dimension_numbers = #tpu.dot_dimension_numbers<[1], [0], [0], [1], [0, 0, 1, 1], [], []>} : vector<8x32xbf16>, vector<32x64xbf16>, vector<8x64xf32> -> vector<8x64xf32>
    %5 = vector.broadcast %2 : vector<1x64xf32> to vector<8x64xf32>
    %6 = arith.addf %4, %5 : vector<8x64xf32>
    %cst_5 = arith.constant 0.000000e+00 : f32
    %7 = vector.broadcast %cst_5 : f32 to vector<8x64xf32>
    %8 = arith.maximumf %6, %7 : vector<8x64xf32>
    %c32 = arith.constant 32 : index
    %c0_6 = arith.constant 0 : index
    %9 = vector.load %arg2[%c32, %c0_6] : memref<272x64xbf16, #tpu.memory_space<vmem>>, vector<64x32xbf16>
    %c8 = arith.constant 8 : index
    %c0_7 = arith.constant 0 : index
    %10 = vector.load %arg3[%c8, %c0_7] : memref<56x64xf32, #tpu.memory_space<vmem>>, vector<1x32xf32>
    %11 = arith.truncf %8 : vector<8x64xf32> to vector<8x64xbf16>
    %cst_8 = arith.constant dense<0.000000e+00> : vector<8x32xf32>
    %12 = tpu.matmul %11, %9, %cst_8 {dimension_numbers = #tpu.dot_dimension_numbers<[1], [0], [0], [1], [0, 0, 1, 1], [], []>} : vector<8x64xbf16>, vector<64x32xbf16>, vector<8x32xf32> -> vector<8x32xf32>
    %13 = vector.broadcast %10 : vector<1x32xf32> to vector<8x32xf32>
    %14 = arith.addf %12, %13 : vector<8x32xf32>
    %cst_9 = arith.constant 0.000000e+00 : f32
    %15 = vector.broadcast %cst_9 : f32 to vector<8x32xf32>
    %16 = arith.maximumf %14, %15 : vector<8x32xf32>
    %c96 = arith.constant 96 : index
    %c0_10 = arith.constant 0 : index
    %17 = vector.load %arg2[%c96, %c0_10] : memref<272x64xbf16, #tpu.memory_space<vmem>>, vector<32x16xbf16>
    %c16 = arith.constant 16 : index
    %c0_11 = arith.constant 0 : index
    %18 = vector.load %arg3[%c16, %c0_11] : memref<56x64xf32, #tpu.memory_space<vmem>>, vector<1x16xf32>
    %19 = arith.truncf %16 : vector<8x32xf32> to vector<8x32xbf16>
    %cst_12 = arith.constant dense<0.000000e+00> : vector<8x16xf32>
    %20 = tpu.matmul %19, %17, %cst_12 {dimension_numbers = #tpu.dot_dimension_numbers<[1], [0], [0], [1], [0, 0, 1, 1], [], []>} : vector<8x32xbf16>, vector<32x16xbf16>, vector<8x16xf32> -> vector<8x16xf32>
    %21 = vector.broadcast %18 : vector<1x16xf32> to vector<8x16xf32>
    %22 = arith.addf %20, %21 : vector<8x16xf32>
    %c128 = arith.constant 128 : index
    %c0_13 = arith.constant 0 : index
    %23 = vector.load %arg2[%c128, %c0_13] : memref<272x64xbf16, #tpu.memory_space<vmem>>, vector<32x16xbf16>
    %c24 = arith.constant 24 : index
    %c0_14 = arith.constant 0 : index
    %24 = vector.load %arg3[%c24, %c0_14] : memref<56x64xf32, #tpu.memory_space<vmem>>, vector<1x16xf32>
    %25 = arith.truncf %16 : vector<8x32xf32> to vector<8x32xbf16>
    %cst_15 = arith.constant dense<0.000000e+00> : vector<8x16xf32>
    %26 = tpu.matmul %25, %23, %cst_15 {dimension_numbers = #tpu.dot_dimension_numbers<[1], [0], [0], [1], [0, 0, 1, 1], [], []>} : vector<8x32xbf16>, vector<32x16xbf16>, vector<8x16xf32> -> vector<8x16xf32>
    %27 = vector.broadcast %24 : vector<1x16xf32> to vector<8x16xf32>
    %28 = arith.addf %26, %27 : vector<8x16xf32>
    %cst_16 = arith.constant 5.000000e-01 : f32
    %29 = vector.broadcast %cst_16 : f32 to vector<8x16xf32>
    %30 = arith.mulf %29, %28 : vector<8x16xf32>
    %31 = math.exp %30 : vector<8x16xf32>
    %c0_17 = arith.constant 0 : index
    %c0_18 = arith.constant 0 : index
    %32 = vector.load %arg1[%c0_17, %c0_18] : memref<8x16xf32, #tpu.memory_space<vmem>>, vector<8x16xf32>
    %33 = arith.mulf %32, %31 : vector<8x16xf32>
    %34 = arith.addf %33, %22 : vector<8x16xf32>
    %c160 = arith.constant 160 : index
    %c0_19 = arith.constant 0 : index
    %35 = vector.load %arg2[%c160, %c0_19] : memref<272x64xbf16, #tpu.memory_space<vmem>>, vector<16x32xbf16>
    %c32_20 = arith.constant 32 : index
    %c0_21 = arith.constant 0 : index
    %36 = vector.load %arg3[%c32_20, %c0_21] : memref<56x64xf32, #tpu.memory_space<vmem>>, vector<1x32xf32>
    %37 = arith.truncf %34 : vector<8x16xf32> to vector<8x16xbf16>
    %cst_22 = arith.constant dense<0.000000e+00> : vector<8x32xf32>
    %38 = tpu.matmul %37, %35, %cst_22 {dimension_numbers = #tpu.dot_dimension_numbers<[1], [0], [0], [1], [0, 0, 1, 1], [], []>} : vector<8x16xbf16>, vector<16x32xbf16>, vector<8x32xf32> -> vector<8x32xf32>
    %39 = vector.broadcast %36 : vector<1x32xf32> to vector<8x32xf32>
    %40 = arith.addf %38, %39 : vector<8x32xf32>
    %cst_23 = arith.constant 0.000000e+00 : f32
    %41 = vector.broadcast %cst_23 : f32 to vector<8x32xf32>
    %42 = arith.maximumf %40, %41 : vector<8x32xf32>
    %c176 = arith.constant 176 : index
    %c0_24 = arith.constant 0 : index
    %43 = vector.load %arg2[%c176, %c0_24] : memref<272x64xbf16, #tpu.memory_space<vmem>>, vector<32x64xbf16>
    %c40 = arith.constant 40 : index
    %c0_25 = arith.constant 0 : index
    %44 = vector.load %arg3[%c40, %c0_25] : memref<56x64xf32, #tpu.memory_space<vmem>>, vector<1x64xf32>
    %45 = arith.truncf %42 : vector<8x32xf32> to vector<8x32xbf16>
    %cst_26 = arith.constant dense<0.000000e+00> : vector<8x64xf32>
    %46 = tpu.matmul %45, %43, %cst_26 {dimension_numbers = #tpu.dot_dimension_numbers<[1], [0], [0], [1], [0, 0, 1, 1], [], []>} : vector<8x32xbf16>, vector<32x64xbf16>, vector<8x64xf32> -> vector<8x64xf32>
    %47 = vector.broadcast %44 : vector<1x64xf32> to vector<8x64xf32>
    %48 = arith.addf %46, %47 : vector<8x64xf32>
    %cst_27 = arith.constant 0.000000e+00 : f32
    %49 = vector.broadcast %cst_27 : f32 to vector<8x64xf32>
    %50 = arith.maximumf %48, %49 : vector<8x64xf32>
    %c208 = arith.constant 208 : index
    %c0_28 = arith.constant 0 : index
    %51 = vector.load %arg2[%c208, %c0_28] : memref<272x64xbf16, #tpu.memory_space<vmem>>, vector<64x32xbf16>
    %c48 = arith.constant 48 : index
    %c0_29 = arith.constant 0 : index
    %52 = vector.load %arg3[%c48, %c0_29] : memref<56x64xf32, #tpu.memory_space<vmem>>, vector<1x32xf32>
    %53 = arith.truncf %50 : vector<8x64xf32> to vector<8x64xbf16>
    %cst_30 = arith.constant dense<0.000000e+00> : vector<8x32xf32>
    %54 = tpu.matmul %53, %51, %cst_30 {dimension_numbers = #tpu.dot_dimension_numbers<[1], [0], [0], [1], [0, 0, 1, 1], [], []>} : vector<8x64xbf16>, vector<64x32xbf16>, vector<8x32xf32> -> vector<8x32xf32>
    %55 = vector.broadcast %52 : vector<1x32xf32> to vector<8x32xf32>
    %56 = arith.addf %54, %55 : vector<8x32xf32>
    %57 = tpu.concatenate %56, %22, %28 in 1 : vector<8x32xf32>, vector<8x16xf32>, vector<8x16xf32> -> vector<8x64xf32>
    %c0_31 = arith.constant 0 : index
    %c0_32 = arith.constant 0 : index
    %58 = vector.load %arg4[%c0_31, %c0_32] : memref<8x64xf32, #tpu.memory_space<vmem>>, vector<8x64xf32>
    tpu.vector_store %arg4[%c0_31, %c0_32], %57 {strides = array<i32>} : memref<8x64xf32, #tpu.memory_space<vmem>>, vector<8x64xf32>,
    return
  }
}

</mosaic_0001>

<llo_original>
// kernel: tpu_custom_call.1
$region0: #{tpu_custom_call.1}
  #allocation0 [shape = 'u32[]', space=smem, size = 0x4, offset = 0x4, fixed_abs, tag = 'smem constant byte address 0x4 - core index']
  #allocation1 [shape = 'u32[144,128]{1,0:T(1,128)}', space=vmem, size = 0x12000, scoped, tag = 'internal scratch']
  %s0 = inlined_call_operand.vmem [shape: f32[8,32], index: 0, kind: input, shape index: {}]
  %s1 = inlined_call_operand.vmem [shape: f32[8,16], index: 1, kind: input, shape index: {}]
  %s2 = inlined_call_operand.vmem [shape: bf16[272,64], index: 2, kind: input, shape index: {}]
  %s3 = inlined_call_operand.vmem [shape: f32[56,64], index: 3, kind: input, shape index: {}]
  %s4 = inlined_call_operand.hbm [shape: f32[8,64], index: 4, kind: output, shape index: {}]
  %s5 = sld [smem:[#allocation0]]
  $region26: #{tpu_custom_call.1} parent=0
    _
  %s7 = ssub.s32 1, %s5
  %s8 = scalar_select 0, %s7, %s5
  $region1: #{tpu_custom_call.1} parent=0
    #allocation2 [shape = 'u8[4096]{0}', space=vmem, size = 0x1000, scoped, tag = 'output window, operand 0, single buffered']
    #allocation3 [shape = 's32[1]{0}', space=sflag, size = 0x4, scoped, tag = 'scoped memory for tpu_custom_call.1']
    %9 = vsyncpa [#allocation3], 0
    // Predicated region
    $region2: #{tpu_custom_call.1} parent=1 // pred_check
      _
    $region3: #{tpu_custom_call.1} parent=1 // pred_check_branch
      %11 = sbr.rel (0) target = $region5
    $region4: #{tpu_custom_call.1} parent=1 // pred_region
      _
    $region5: #{tpu_custom_call.1} parent=1 // pred_fallthru
      _
    // Predicated region
    $region6: #{tpu_custom_call.1} parent=1 // pred_check
      _
    $region7: #{tpu_custom_call.1} parent=1 // pred_check_branch
      %13 = sbr.rel (0) target = $region9
    $region8: #{tpu_custom_call.1} parent=1 // pred_region
      _
    $region9: #{tpu_custom_call.1} parent=1 // pred_fallthru
      _
    // Predicated region
    $region10: #{tpu_custom_call.1} parent=1 // pred_check
      _
    $region11: #{tpu_custom_call.1} parent=1 // pred_check_branch
      %15 = sbr.rel (0) target = $region13
    $region12: #{tpu_custom_call.1} parent=1 // pred_region
      _
    $region13: #{tpu_custom_call.1} parent=1 // pred_fallthru
      _
    // Predicated region
    $region14: #{tpu_custom_call.1} parent=1 // pred_check
      _
    $region15: #{tpu_custom_call.1} parent=1 // pred_check_branch
      %17 = sbr.rel (0) target = $region17
    $region16: #{tpu_custom_call.1} parent=1 // pred_region
      _
    $region17: #{tpu_custom_call.1} parent=1 // pred_fallthru
      _
    %v19 = vld [vmem:[%s0] sm:$0xff]
    %v20 = vld [vmem:[%s2] sm:$0xf]
    %v21 = vld [vmem:[%s2 + $0x4] sm:$0xf]
    %v22 = vld [vmem:[%s2 + $0x8] sm:$0xf]
    %v23 = vld [vmem:[%s2 + $0xc] sm:$0xf]
    %v24 = vld [vmem:[%s3] sm:$0x1]
    %v25 = vpack.c.bf16 %v19, %v19
    %v26 = vlaneseq
    %v27 = vshrl.u32 %v26, 7
    %v28 = vsub.s32 0, %v27
    %v29 = vrot.slane %v24, %v28
    %v34 = vunpack.c.l.b16 %v20
    %v35 = vunpack.c.l.b16 %v21
    %v36 = vunpack.c.l.b16 %v22
    %v37 = vunpack.c.l.b16 %v23
    %v38 = vpack.c.b16 %v35, %v34
    %v39 = vpack.c.b16 %v37, %v36
    %vm42 = vcmask 261120
    %v44 = vsel %vm42, %v25, 0
    %46 = vmatprep.subr.bf16.mxu0 0
    %47 = vmatpush1.bf16.msra.mxu0 %v38
    %48 = vmatprep.subr.bf16.mxu0 0
    %49 = vmatpush1.bf16.msra.mxu0 %v39
    %50 = vmatprep.subr.bf16.mxu0 0
    %51 = vmatpush1.bf16.msra.mxu0 0
    %52 = vmatprep.subr.bf16.mxu0 0
    %53 = vmatpush1.bf16.msra.mxu0 0
    %54 = vmatprep.subr.bf16.mxu0 0
    %55 = vmatpush1.bf16.msra.mxu0 0
    %56 = vmatprep.subr.bf16.mxu0 0
    %57 = vmatpush1.bf16.msra.mxu0 0
    %58 = vmatprep.subr.bf16.mxu0 0
    %59 = vmatpush1.bf16.msra.mxu0 0
    %60 = vmatprep.subr.bf16.mxu0 0
    %61 = vmatpush1.bf16.msra.mxu0 0
    %62 = vmatprep.subr.bf16.mxu0 0
    %63 = vmatpush1.bf16.msra.mxu0 0
    %64 = vmatprep.subr.bf16.mxu0 0
    %65 = vmatpush1.bf16.msra.mxu0 0
    %66 = vmatprep.subr.bf16.mxu0 0
    %67 = vmatpush1.bf16.msra.mxu0 0
    %68 = vmatprep.subr.bf16.mxu0 0
    %69 = vmatpush1.bf16.msra.mxu0 0
    %70 = vmatprep.subr.bf16.mxu0 0
    %71 = vmatpush1.bf16.msra.mxu0 0
    %72 = vmatprep.subr.bf16.mxu0 0
    %73 = vmatpush1.bf16.msra.mxu0 0
    %74 = vmatprep.subr.bf16.mxu0 0
    %75 = vmatpush1.bf16.msra.mxu0 0
    %76 = vmatprep.subr.bf16.mxu0 0
    %77 = vmatpush1.bf16.msra.mxu0 0
    %78 = vmatprep.mubr.bf16.mxu0 0
    %79 = vmatmul.mubr.bf16.gmra.mrb[0].mxu0 %v44
    %v80 = vpop.f32.mrb[0].mxu0
    %v81 = vadd.f32 %v29, %v80
    %v82 = vpop.f32.mrb[0].mxu0
    %v83 = vpop.f32.mrb[0].mxu0
    %v84 = vpop.f32.mrb[0].mxu0
    %85 = vdwg.mxu0
    %v86 = vmax.f32 %v81, 0.0
    %v87 = vld [vmem:[%s2 + $0x10] sm:$0xf]
    %v88 = vld [vmem:[%s2 + $0x14] sm:$0xf]
    %v89 = vld [vmem:[%s2 + $0x18] sm:$0xf]
    %v90 = vld [vmem:[%s2 + $0x1c] sm:$0xf]
    %v91 = vld [vmem:[%s2 + $0x20] sm:$0xf]
    %v92 = vld [vmem:[%s2 + $0x24] sm:$0xf]
    %v93 = vld [vmem:[%s2 + $0x28] sm:$0xf]
    %v94 = vld [vmem:[%s2 + $0x2c] sm:$0xf]
    %v95 = vld [vmem:[%s3 + $0x8] sm:$0x1]
    %v96 = vpack.c.bf16 %v86, %v86
    %v97 = vlaneseq
    %v98 = vshrl.u32 %v97, 7
    %v99 = vsub.s32 0, %v98
    %v100 = vrot.slane %v95, %v99
    %v109 = vunpack.c.l.b16 %v87
    %v110 = vunpack.c.l.b16 %v88
    %v111 = vunpack.c.l.b16 %v89
    %v112 = vunpack.c.l.b16 %v90
    %v113 = vunpack.c.l.b16 %v91
    %v114 = vunpack.c.l.b16 %v92
    %v115 = vunpack.c.l.b16 %v93
    %v116 = vunpack.c.l.b16 %v94
    %v117 = vpack.c.b16 %v110, %v109
    %v118 = vpack.c.b16 %v112, %v111
    %v119 = vpack.c.b16 %v114, %v113
    %v120 = vpack.c.b16 %v116, %v115
    %vm125 = vcmask 523264
    %v127 = vsel %vm125, %v96, 0
    %129 = vmatprep.subr.bf16.mxu0 0
    %130 = vmatpush1.bf16.msra.mxu0 %v117
    %131 = vmatprep.subr.bf16.mxu0 0
    %132 = vmatpush1.bf16.msra.mxu0 %v118
    %133 = vmatprep.subr.bf16.mxu0 0
    %134 = vmatpush1.bf16.msra.mxu0 %v119
    %135 = vmatprep.subr.bf16.mxu0 0
    %136 = vmatpush1.bf16.msra.mxu0 %v120
    %137 = vmatprep.subr.bf16.mxu0 0
    %138 = vmatpush1.bf16.msra.mxu0 0
    %139 = vmatprep.subr.bf16.mxu0 0
    %140 = vmatpush1.bf16.msra.mxu0 0
    %141 = vmatprep.subr.bf16.mxu0 0
    %142 = vmatpush1.bf16.msra.mxu0 0
    %143 = vmatprep.subr.bf16.mxu0 0
    %144 = vmatpush1.bf16.msra.mxu0 0
    %145 = vmatprep.subr.bf16.mxu0 0
    %146 = vmatpush1.bf16.msra.mxu0 0
    %147 = vmatprep.subr.bf16.mxu0 0
    %148 = vmatpush1.bf16.msra.mxu0 0
    %149 = vmatprep.subr.bf16.mxu0 0
    %150 = vmatpush1.bf16.msra.mxu0 0
    %151 = vmatprep.subr.bf16.mxu0 0
    %152 = vmatpush1.bf16.msra.mxu0 0
    %153 = vmatprep.subr.bf16.mxu0 0
    %154 = vmatpush1.bf16.msra.mxu0 0
    %155 = vmatprep.subr.bf16.mxu0 0
    %156 = vmatpush1.bf16.msra.mxu0 0
    %157 = vmatprep.subr.bf16.mxu0 0
    %158 = vmatpush1.bf16.msra.mxu0 0
    %159 = vmatprep.subr.bf16.mxu0 0
    %160 = vmatpush1.bf16.msra.mxu0 0
    %161 = vmatprep.mubr.bf16.mxu0 0
    %162 = vmatmul.mubr.bf16.gmra.mrb[0].mxu0 %v127
    %v163 = vpop.f32.mrb[0].mxu0
    %v164 = vadd.f32 %v100, %v163
    %v165 = vpop.f32.mrb[0].mxu0
    %v166 = vpop.f32.mrb[0].mxu0
    %v167 = vpop.f32.mrb[0].mxu0
    %168 = vdwg.mxu0
    %v169 = vmax.f32 %v164, 0.0
    %v170 = vld [vmem:[%s2 + $0x30] sm:$0xf]
    %v171 = vld [vmem:[%s2 + $0x34] sm:$0xf]
    %v172 = vld [vmem:[%s2 + $0x38] sm:$0xf]
    %v173 = vld [vmem:[%s2 + $0x3c] sm:$0xf]
    %v174 = vld [vmem:[%s3 + $0x10] sm:$0x1]
    %v175 = vpack.c.bf16 %v169, %v169
    %v176 = vlaneseq
    %v177 = vshrl.u32 %v176, 7
    %v178 = vsub.s32 0, %v177
    %v179 = vrot.slane %v174, %v178
    %v184 = vunpack.c.l.b16 %v170
    %v185 = vunpack.c.l.b16 %v171
    %v186 = vunpack.c.l.b16 %v172
    %v187 = vunpack.c.l.b16 %v173
    %v188 = vpack.c.b16 %v185, %v184
    %v189 = vpack.c.b16 %v187, %v186
    %v193 = vsel %vm42, %v175, 0
    %195 = vmatprep.subr.bf16.mxu0 0
    %196 = vmatpush1.bf16.msra.mxu0 %v188
    %197 = vmatprep.subr.bf16.mxu0 0
    %198 = vmatpush1.bf16.msra.mxu0 %v189
    %199 = vmatprep.subr.bf16.mxu0 0
    %200 = vmatpush1.bf16.msra.mxu0 0
    %201 = vmatprep.subr.bf16.mxu0 0
    %202 = vmatpush1.bf16.msra.mxu0 0
    %203 = vmatprep.subr.bf16.mxu0 0
    %204 = vmatpush1.bf16.msra.mxu0 0
    %205 = vmatprep.subr.bf16.mxu0 0
    %206 = vmatpush1.bf16.msra.mxu0 0
    %207 = vmatprep.subr.bf16.mxu0 0
    %208 = vmatpush1.bf16.msra.mxu0 0
    %209 = vmatprep.subr.bf16.mxu0 0
    %210 = vmatpush1.bf16.msra.mxu0 0
    %211 = vmatprep.subr.bf16.mxu0 0
    %212 = vmatpush1.bf16.msra.mxu0 0
    %213 = vmatprep.subr.bf16.mxu0 0
    %214 = vmatpush1.bf16.msra.mxu0 0
    %215 = vmatprep.subr.bf16.mxu0 0
    %216 = vmatpush1.bf16.msra.mxu0 0
    %217 = vmatprep.subr.bf16.mxu0 0
    %218 = vmatpush1.bf16.msra.mxu0 0
    %219 = vmatprep.subr.bf16.mxu0 0
    %220 = vmatpush1.bf16.msra.mxu0 0
    %221 = vmatprep.subr.bf16.mxu0 0
    %222 = vmatpush1.bf16.msra.mxu0 0
    %223 = vmatprep.subr.bf16.mxu0 0
    %224 = vmatpush1.bf16.msra.mxu0 0
    %225 = vmatprep.subr.bf16.mxu0 0
    %226 = vmatpush1.bf16.msra.mxu0 0
    %227 = vmatprep.mubr.bf16.mxu0 0
    %228 = vmatmul.mubr.bf16.gmra.mrb[0].mxu0 %v193
    %v229 = vpop.f32.mrb[0].mxu0
    %v230 = vadd.f32 %v179, %v229
    %v231 = vpop.f32.mrb[0].mxu0
    %v232 = vpop.f32.mrb[0].mxu0
    %v233 = vpop.f32.mrb[0].mxu0
    %234 = vdwg.mxu0
    %v235 = vld [vmem:[%s2 + $0x40] sm:$0xf]
    %v236 = vld [vmem:[%s2 + $0x44] sm:$0xf]
    %v237 = vld [vmem:[%s2 + $0x48] sm:$0xf]
    %v238 = vld [vmem:[%s2 + $0x4c] sm:$0xf]
    %v239 = vld [vmem:[%s3 + $0x18] sm:$0x1]
    %v240 = vlaneseq
    %v241 = vshrl.u32 %v240, 7
    %v242 = vsub.s32 0, %v241
    %v243 = vrot.slane %v239, %v242
    %v248 = vunpack.c.l.b16 %v235
    %v249 = vunpack.c.l.b16 %v236
    %v250 = vunpack.c.l.b16 %v237
    %v251 = vunpack.c.l.b16 %v238
    %v252 = vpack.c.b16 %v249, %v248
    %v253 = vpack.c.b16 %v251, %v250
    %256 = vmatprep.subr.bf16.mxu0 0
    %257 = vmatpush1.bf16.msra.mxu0 %v252
    %258 = vmatprep.subr.bf16.mxu0 0
    %259 = vmatpush1.bf16.msra.mxu0 %v253
    %260 = vmatprep.subr.bf16.mxu0 0
    %261 = vmatpush1.bf16.msra.mxu0 0
    %262 = vmatprep.subr.bf16.mxu0 0
    %263 = vmatpush1.bf16.msra.mxu0 0
    %264 = vmatprep.subr.bf16.mxu0 0
    %265 = vmatpush1.bf16.msra.mxu0 0
    %266 = vmatprep.subr.bf16.mxu0 0
    %267 = vmatpush1.bf16.msra.mxu0 0
    %268 = vmatprep.subr.bf16.mxu0 0
    %269 = vmatpush1.bf16.msra.mxu0 0
    %270 = vmatprep.subr.bf16.mxu0 0
    %271 = vmatpush1.bf16.msra.mxu0 0
    %272 = vmatprep.subr.bf16.mxu0 0
    %273 = vmatpush1.bf16.msra.mxu0 0
    %274 = vmatprep.subr.bf16.mxu0 0
    %275 = vmatpush1.bf16.msra.mxu0 0
    %276 = vmatprep.subr.bf16.mxu0 0
    %277 = vmatpush1.bf16.msra.mxu0 0
    %278 = vmatprep.subr.bf16.mxu0 0
    %279 = vmatpush1.bf16.msra.mxu0 0
    %280 = vmatprep.subr.bf16.mxu0 0
    %281 = vmatpush1.bf16.msra.mxu0 0
    %282 = vmatprep.subr.bf16.mxu0 0
    %283 = vmatpush1.bf16.msra.mxu0 0
    %284 = vmatprep.subr.bf16.mxu0 0
    %285 = vmatpush1.bf16.msra.mxu0 0
    %286 = vmatprep.subr.bf16.mxu0 0
    %287 = vmatpush1.bf16.msra.mxu0 0
    %288 = vmatprep.mubr.bf16.mxu0 0
    %289 = vmatmul.mubr.bf16.gmra.mrb[0].mxu0 %v193
    %v290 = vpop.f32.mrb[0].mxu0
    %v291 = vadd.f32 %v243, %v290
    %v292 = vpop.f32.mrb[0].mxu0
    %v293 = vpop.f32.mrb[0].mxu0
    %v294 = vpop.f32.mrb[0].mxu0
    %295 = vdwg.mxu0
    %v296 = vmul.f32 %v291, 0.5
    %v297 = vmul.f32 %v296, 1.442695
    %v298 = vpow.pop %v297
    %v299 = vld [vmem:[%s1] sm:$0xff]
    %v300 = vmul.f32 %v299, %v298
    %v301 = vadd.f32 %v300, %v230
    %v302 = vld [vmem:[%s2 + $0x50] sm:$0xf]
    %v303 = vld [vmem:[%s2 + $0x54] sm:$0xf]
    %v304 = vld [vmem:[%s3 + $0x20] sm:$0x1]
    %v305 = vpack.c.bf16 %v301, %v301
    %v306 = vlaneseq
    %v307 = vshrl.u32 %v306, 7
    %v308 = vsub.s32 0, %v307
    %v309 = vrot.slane %v304, %v308
    %v312 = vunpack.c.l.b16 %v302
    %v313 = vunpack.c.l.b16 %v303
    %v314 = vpack.c.b16 %v313, %v312
    %vm316 = vcmask 130048
    %v318 = vsel %vm316, %v305, 0
    %320 = vmatprep.subr.bf16.mxu0 0
    %321 = vmatpush1.bf16.msra.mxu0 %v314
    %322 = vmatprep.subr.bf16.mxu0 0
    %323 = vmatpush1.bf16.msra.mxu0 0
    %324 = vmatprep.subr.bf16.mxu0 0
    %325 = vmatpush1.bf16.msra.mxu0 0
    %326 = vmatprep.subr.bf16.mxu0 0
    %327 = vmatpush1.bf16.msra.mxu0 0
    %328 = vmatprep.subr.bf16.mxu0 0
    %329 = vmatpush1.bf16.msra.mxu0 0
    %330 = vmatprep.subr.bf16.mxu0 0
    %331 = vmatpush1.bf16.msra.mxu0 0
    %332 = vmatprep.subr.bf16.mxu0 0
    %333 = vmatpush1.bf16.msra.mxu0 0
    %334 = vmatprep.subr.bf16.mxu0 0
    %335 = vmatpush1.bf16.msra.mxu0 0
    %336 = vmatprep.subr.bf16.mxu0 0
    %337 = vmatpush1.bf16.msra.mxu0 0
    %338 = vmatprep.subr.bf16.mxu0 0
    %339 = vmatpush1.bf16.msra.mxu0 0
    %340 = vmatprep.subr.bf16.mxu0 0
    %341 = vmatpush1.bf16.msra.mxu0 0
    %342 = vmatprep.subr.bf16.mxu0 0
    %343 = vmatpush1.bf16.msra.mxu0 0
    %344 = vmatprep.subr.bf16.mxu0 0
    %345 = vmatpush1.bf16.msra.mxu0 0
    %346 = vmatprep.subr.bf16.mxu0 0
    %347 = vmatpush1.bf16.msra.mxu0 0
    %348 = vmatprep.subr.bf16.mxu0 0
    %349 = vmatpush1.bf16.msra.mxu0 0
    %350 = vmatprep.subr.bf16.mxu0 0
    %351 = vmatpush1.bf16.msra.mxu0 0
    %352 = vmatprep.mubr.bf16.mxu0 0
    %353 = vmatmul.mubr.bf16.gmra.mrb[0].mxu0 %v318
    %v354 = vpop.f32.mrb[0].mxu0
    %v355 = vadd.f32 %v309, %v354
    %v356 = vpop.f32.mrb[0].mxu0
    %v357 = vpop.f32.mrb[0].mxu0
    %v358 = vpop.f32.mrb[0].mxu0
    %359 = vdwg.mxu0
    %v360 = vmax.f32 %v355, 0.0
    %v361 = vld [vmem:[%s2 + $0x58] sm:$0xf]
    %v362 = vld [vmem:[%s2 + $0x5c] sm:$0xf]
    %v363 = vld [vmem:[%s2 + $0x60] sm:$0xf]
    %v364 = vld [vmem:[%s2 + $0x64] sm:$0xf]
    %v365 = vld [vmem:[%s3 + $0x28] sm:$0x1]
    %v366 = vpack.c.bf16 %v360, %v360
    %v367 = vlaneseq
    %v368 = vshrl.u32 %v367, 7
    %v369 = vsub.s32 0, %v368
    %v370 = vrot.slane %v365, %v369
    %v375 = vunpack.c.l.b16 %v361
    %v376 = vunpack.c.l.b16 %v362
    %v377 = vunpack.c.l.b16 %v363
    %v378 = vunpack.c.l.b16 %v364
    %v379 = vpack.c.b16 %v376, %v375
    %v380 = vpack.c.b16 %v378, %v377
    %v384 = vsel %vm42, %v366, 0
    %386 = vmatprep.subr.bf16.mxu0 0
    %387 = vmatpush1.bf16.msra.mxu0 %v379
    %388 = vmatprep.subr.bf16.mxu0 0
    %389 = vmatpush1.bf16.msra.mxu0 %v380
    %390 = vmatprep.subr.bf16.mxu0 0
    %391 = vmatpush1.bf16.msra.mxu0 0
    %392 = vmatprep.subr.bf16.mxu0 0
    %393 = vmatpush1.bf16.msra.mxu0 0
    %394 = vmatprep.subr.bf16.mxu0 0
    %395 = vmatpush1.bf16.msra.mxu0 0
    %396 = vmatprep.subr.bf16.mxu0 0
    %397 = vmatpush1.bf16.msra.mxu0 0
    %398 = vmatprep.subr.bf16.mxu0 0
    %399 = vmatpush1.bf16.msra.mxu0 0
    %400 = vmatprep.subr.bf16.mxu0 0
    %401 = vmatpush1.bf16.msra.mxu0 0
    %402 = vmatprep.subr.bf16.mxu0 0
    %403 = vmatpush1.bf16.msra.mxu0 0
    %404 = vmatprep.subr.bf16.mxu0 0
    %405 = vmatpush1.bf16.msra.mxu0 0
    %406 = vmatprep.subr.bf16.mxu0 0
    %407 = vmatpush1.bf16.msra.mxu0 0
    %408 = vmatprep.subr.bf16.mxu0 0
    %409 = vmatpush1.bf16.msra.mxu0 0
    %410 = vmatprep.subr.bf16.mxu0 0
    %411 = vmatpush1.bf16.msra.mxu0 0
    %412 = vmatprep.subr.bf16.mxu0 0
    %413 = vmatpush1.bf16.msra.mxu0 0
    %414 = vmatprep.subr.bf16.mxu0 0
    %415 = vmatpush1.bf16.msra.mxu0 0
    %416 = vmatprep.subr.bf16.mxu0 0
    %417 = vmatpush1.bf16.msra.mxu0 0
    %418 = vmatprep.mubr.bf16.mxu0 0
    %419 = vmatmul.mubr.bf16.gmra.mrb[0].mxu0 %v384
    %v420 = vpop.f32.mrb[0].mxu0
    %v421 = vadd.f32 %v370, %v420
    %v422 = vpop.f32.mrb[0].mxu0
    %v423 = vpop.f32.mrb[0].mxu0
    %v424 = vpop.f32.mrb[0].mxu0
    %425 = vdwg.mxu0
    %v426 = vmax.f32 %v421, 0.0
    %v427 = vld [vmem:[%s2 + $0x68] sm:$0xf]
    %v428 = vld [vmem:[%s2 + $0x6c] sm:$0xf]
    %v429 = vld [vmem:[%s2 + $0x70] sm:$0xf]
    %v430 = vld [vmem:[%s2 + $0x74] sm:$0xf]
    %v431 = vld [vmem:[%s2 + $0x78] sm:$0xf]
    %v432 = vld [vmem:[%s2 + $0x7c] sm:$0xf]
    %v433 = vld [vmem:[%s2 + $0x80] sm:$0xf]
    %v434 = vld [vmem:[%s2 + $0x84] sm:$0xf]
    %v435 = vld [vmem:[%s3 + $0x30] sm:$0x1]
    %v436 = vpack.c.bf16 %v426, %v426
    %v437 = vlaneseq
    %v438 = vshrl.u32 %v437, 7
    %v439 = vsub.s32 0, %v438
    %v440 = vrot.slane %v435, %v439
    %v449 = vunpack.c.l.b16 %v427
    %v450 = vunpack.c.l.b16 %v428
    %v451 = vunpack.c.l.b16 %v429
    %v452 = vunpack.c.l.b16 %v430
    %v453 = vunpack.c.l.b16 %v431
    %v454 = vunpack.c.l.b16 %v432
    %v455 = vunpack.c.l.b16 %v433
    %v456 = vunpack.c.l.b16 %v434
    %v457 = vpack.c.b16 %v450, %v449
    %v458 = vpack.c.b16 %v452, %v451
    %v459 = vpack.c.b16 %v454, %v453
    %v460 = vpack.c.b16 %v456, %v455
    %v466 = vsel %vm125, %v436, 0
    %468 = vmatprep.subr.bf16.mxu0 0
    %469 = vmatpush1.bf16.msra.mxu0 %v457
    %470 = vmatprep.subr.bf16.mxu0 0
    %471 = vmatpush1.bf16.msra.mxu0 %v458
    %472 = vmatprep.subr.bf16.mxu0 0
    %473 = vmatpush1.bf16.msra.mxu0 %v459
    %474 = vmatprep.subr.bf16.mxu0 0
    %475 = vmatpush1.bf16.msra.mxu0 %v460
    %476 = vmatprep.subr.bf16.mxu0 0
    %477 = vmatpush1.bf16.msra.mxu0 0
    %478 = vmatprep.subr.bf16.mxu0 0
    %479 = vmatpush1.bf16.msra.mxu0 0
    %480 = vmatprep.subr.bf16.mxu0 0
    %481 = vmatpush1.bf16.msra.mxu0 0
    %482 = vmatprep.subr.bf16.mxu0 0
    %483 = vmatpush1.bf16.msra.mxu0 0
    %484 = vmatprep.subr.bf16.mxu0 0
    %485 = vmatpush1.bf16.msra.mxu0 0
    %486 = vmatprep.subr.bf16.mxu0 0
    %487 = vmatpush1.bf16.msra.mxu0 0
    %488 = vmatprep.subr.bf16.mxu0 0
    %489 = vmatpush1.bf16.msra.mxu0 0
    %490 = vmatprep.subr.bf16.mxu0 0
    %491 = vmatpush1.bf16.msra.mxu0 0
    %492 = vmatprep.subr.bf16.mxu0 0
    %493 = vmatpush1.bf16.msra.mxu0 0
    %494 = vmatprep.subr.bf16.mxu0 0
    %495 = vmatpush1.bf16.msra.mxu0 0
    %496 = vmatprep.subr.bf16.mxu0 0
    %497 = vmatpush1.bf16.msra.mxu0 0
    %498 = vmatprep.subr.bf16.mxu0 0
    %499 = vmatpush1.bf16.msra.mxu0 0
    %500 = vmatprep.mubr.bf16.mxu0 0
    %501 = vmatmul.mubr.bf16.gmra.mrb[0].mxu0 %v466
    %v502 = vpop.f32.mrb[0].mxu0
    %v503 = vadd.f32 %v440, %v502
    %v504 = vpop.f32.mrb[0].mxu0
    %v505 = vpop.f32.mrb[0].mxu0
    %v506 = vpop.f32.mrb[0].mxu0
    %507 = vdwg.mxu0
    %509 = vrot.lane.b32.xlu0 %v230, 32
    %v510 = vpop.permute.xlu0 %509
    %513 = vrot.lane.b32.xlu0 %v291, 48
    %v514 = vpop.permute.xlu0 %513
    %v516 = vsel %vm42, %v503, %v510
    %vm517 = vcmask 392192
    %v518 = vsel %vm517, %v516, %v514
    %519 = vst.msk [vmem:[#allocation2] sm:$0xff] %vm125, %v518
    // Predicated region
    $region18: #{tpu_custom_call.1} parent=1 // pred_check
      _
    $region19: #{tpu_custom_call.1} parent=1 // pred_check_branch
      %521 = sbr.rel (0) target = $region21
    $region20: #{tpu_custom_call.1} parent=1 // pred_region
      %s523 = ssub.s32 128, 128
      %524 = vsyncadd [#allocation3], %s523
      %s526 = sshll.u32 [#allocation2], 4
      %s527 = int_to_ptr.vmem [resolvable:$true] %s526
      %529 = dma.vmem_to_hbm [thread:$0]  %s527, 128, %s4, [#allocation3]
    $region21: #{tpu_custom_call.1} parent=1 // pred_fallthru
      _
    // Predicated region
    $region22: #{tpu_custom_call.1} parent=1 // pred_check
      _
    $region23: #{tpu_custom_call.1} parent=1 // pred_check_branch
      %531 = sbr.rel (0) target = $region25
    $region24: #{tpu_custom_call.1} parent=1 // pred_region
      %532 = dma.done [#allocation3], 128
    $region25: #{tpu_custom_call.1} parent=1 // pred_fallthru
      _
    %533 = vsyncpa [#allocation3], 1

</llo_original>
